<compile_context>
chip_gen: v6e
topology: v6e:2x2x1
jax: 0.10.0
libtpu: 0.0.40
codegen_flags: <defaults>
</compile_context>

<pallas_src>
import functools

import jax
import jax.numpy as jnp
from jax.experimental import pallas as pl
from jax.experimental.pallas import tpu as pltpu


def _mod(x, m):
    """x % m, via bit-mask when m is a power of two (cheap VPU path)."""
    if m & (m - 1) == 0:
        return x & (m - 1)
    return x % m


def _floordiv(x, m):
    """x // m, via shift when m is a power of two (cheap VPU path)."""
    if m & (m - 1) == 0:
        return x >> (m.bit_length() - 1)
    return x // m


def _conv3x3_im2col_kernel(x_ref, w_ref, o_ref, line_ref, col_ref, *, H, W, N):
    """All N images at once: 3x3 same-padding conv as one im2col matmul.

    x_ref:    (N, Cin, H*W)        images, spatial flattened onto the lane axis
    w_ref:    (Cout, K_pad)        weights; column k = (dy*3+dx)*G + cin (G = Cin
                                   padded to 8), then an 8-wide [bias, 0, ...] group
    o_ref:    (N, Cout, H*W)       conv output (pre pixel-shuffle)
    line_ref: (G, PAD+N*H*W+PAD)   VMEM scratch: zero-bordered, back-to-back images
    col_ref:  (K_pad, N*H*W)       VMEM scratch: im2col operand (+ ones/bias group)
    """
    cin = x_ref.shape[1]
    g = line_ref.shape[0]                    # Cin padded to a multiple of 8
    hw = H * W
    nhw = N * hw
    kpad = col_ref.shape[0]
    pad = (line_ref.shape[1] - nhw) // 2     # lane-aligned zero border, >= W + 1

    # ---- fused zero padding: whole line zeroed once (rows >= Cin stay zero, so
    # tap loads come back already padded to G sublanes); then pack the N images
    # back to back into the middle with lane-aligned stores.
    line_ref[...] = jnp.zeros(line_ref.shape, jnp.float32)
    for n in range(N):                       # static unroll, N is tiny
        line_ref[0:cin, pad + n * hw:pad + (n + 1) * hw] = (
            x_ref[n].astype(jnp.float32))

    # ---- border masks over the packed (n, h, w) lane index (computed once) ----
    lane = jax.lax.broadcasted_iota(jnp.int32, (g, nhw), 1)
    xcol = _mod(lane, W)                     # w coordinate within a row
    hrow = _floordiv(_mod(lane, hw), W)      # h coordinate within an image
    not_left = xcol != 0                     # dx=0 reads w-1: zero at w == 0
    not_right = xcol != (W - 1)              # dx=2 reads w+1: zero at w == W-1
    not_top = hrow != 0                      # dy=0 reads h-1: zero at h == 0
    not_bot = hrow != (H - 1)                # dy=2 reads h+1: zero at h == H-1

    # ---- im2col: 9 shifted windows -> 8-row groups of col_ref ----
    # Every store below is a full G(=8)-sublane, 128-lane-aligned tile store.
    base = pad - (W + 1)
    for dy in range(3):
        for dx in range(3):
            start = base + dy * W + dx
            tap = line_ref[:, start:start + nhw]          # (G, N*H*W) lane slice
            mask = None
            if dx == 0:
                mask = not_left
            elif dx == 2:
                mask = not_right
            if dy == 0:
                mask = not_top if mask is None else (mask & not_top)
            elif dy == 2:
                mask = not_bot if mask is None else (mask & not_bot)
            if mask is not None:
                tap = jnp.where(mask, tap, 0.0)
            t = dy * 3 + dx
            col_ref[t * g:(t + 1) * g, :] = tap

    # Bias group: ones in sublane 0, zeros in sublanes 1..7.  Folds the conv bias
    # into the matmul and guarantees every K-padding row is written (no stale VMEM).
    sub = jax.lax.broadcasted_iota(jnp.int32, (kpad - 9 * g, nhw), 0)
    col_ref[9 * g:, :] = jnp.where(sub == 0, 1.0, 0.0).astype(jnp.float32)

    # ---- single MXU matmul: (Cout, K_pad) @ (K_pad, N*H*W) -> (Cout, N*H*W) ----
    acc = jnp.dot(w_ref[...], col_ref[...], preferred_element_type=jnp.float32)

    # ---- lane-dense output: one aligned (Cout, H*W) slab per image ----
    for n in range(N):
        o_ref[n] = acc[:, n * hw:(n + 1) * hw].astype(o_ref.dtype)


@functools.partial(jax.jit, static_argnums=3)
def upsample_forward(x_nchw, w_oihw, bias, upscale_factor):
    """Upsample.forward: Conv2d(k=3, padding=1) followed by PixelShuffle(r)."""
    N, Cin, H, W = x_nchw.shape
    Cout = w_oihw.shape[0]
    r = upscale_factor
    HW = H * W
    NHW = N * HW

    G = -(-Cin // 8) * 8                     # sublane-aligned rows per tap group
    K_pad = 9 * G + 8                        # 9 tap groups + one 8-row bias group
    PAD = -(-(W + 1) // 128) * 128           # lane-aligned zero border >= W + 1
    LINE = PAD + NHW + PAD

    # ---- weight/bias prep (tiny, weight-sized ops only) ----
    # OIHW -> (Cout, dy, dx, Cin) -> zero-pad Cin to G -> (Cout, 9*G), then the
    # 8-wide bias group [bias, 0, ..., 0];  column k = (dy*3+dx)*G + cin.
    w_t = jnp.transpose(w_oihw, (0, 2, 3, 1)).reshape(Cout, 9, Cin).astype(jnp.float32)
    w_t = jnp.concatenate(
        [w_t, jnp.zeros((Cout, 9, G - Cin), jnp.float32)], axis=-1)
    bias_grp = jnp.concatenate(
        [bias.reshape(Cout, 1).astype(jnp.float32), jnp.zeros((Cout, 7), jnp.float32)],
        axis=-1)
    w_aug = jnp.concatenate([w_t.reshape(Cout, 9 * G), bias_grp], axis=-1)

    # ---- Pallas kernel: a single grid step over all N images ----
    x_flat = x_nchw.reshape(N, Cin, HW)      # no-copy reshape, stays NCHW order
    kernel = functools.partial(_conv3x3_im2col_kernel, H=H, W=W, N=N)
    y = pl.pallas_call(
        kernel,
        out_shape=jax.ShapeDtypeStruct((N, Cout, HW), x_nchw.dtype),
        grid_spec=pltpu.PrefetchScalarGridSpec(
            num_scalar_prefetch=0,
            grid=(1,),
            in_specs=[
                pl.BlockSpec((N, Cin, HW), lambda i: (0, 0, 0)),
                pl.BlockSpec((Cout, K_pad), lambda i: (0, 0)),
            ],
            out_specs=pl.BlockSpec((N, Cout, HW), lambda i: (0, 0, 0)),
            scratch_shapes=[
                pltpu.VMEM((G, LINE), jnp.float32),
                pltpu.VMEM((K_pad, NHW), jnp.float32),
            ],
        ),
        compiler_params=pltpu.CompilerParams(
            dimension_semantics=("arbitrary",)),
    )(x_flat, w_aug)

    # ---- PixelShuffle ----
    # TODO(synk): the r-interleaved output scatter (stride-r along both spatial
    # axes) is not expressible as contiguous BlockSpec blocks / aligned vector
    # stores, and an in-register (w,rx)-interleave needs sub-lane relayouts, so
    # the shuffle stays as one fused XLA transpose of the small conv output.
    C = Cout // (r * r)
    y = y.reshape(N, C, r, r, H, W)
    y = jnp.transpose(y, (0, 1, 4, 2, 5, 3))      # (N, C, H, r, W, r)
    return y.reshape(N, C, H * r, W * r)


def _reference(x_nchw, w_oihw, bias, upscale_factor):
    """Pure-JAX (XLA) reference for correctness checking."""
    y = jax.lax.conv_general_dilated(
        x_nchw, w_oihw, window_strides=(1, 1), padding=((1, 1), (1, 1)),
        dimension_numbers=("NCHW", "OIHW", "NCHW"))
    y = y + bias.reshape(1, -1, 1, 1)
    N, Ct, H, W = y.shape
    r = upscale_factor
    C = Ct // (r * r)
    y = y.reshape(N, C, r, r, H, W)
    y = jnp.transpose(y, (0, 1, 4, 2, 5, 3))      # (N, C, H, r, W, r)
    return y.reshape(N, C, H * r, W * r)


if __name__ == "__main__":
    # Module config: Upsample(in_channels=4, out_channels=4, upscale_factor=2)
    in_channels, out_channels, upscale = 4, 4, 2
    N, H, W = 2, 16, 16
    cout_total = out_channels * upscale ** 2      # 16

    key = jax.random.PRNGKey(0)
    kx, kw, kb = jax.random.split(key, 3)
    x = jax.random.normal(kx, (N, in_channels, H, W), dtype=jnp.float32)
    fan_in = in_channels * 3 * 3
    bound = 1.0 / (fan_in ** 0.5)
    w = jax.random.uniform(kw, (cout_total, in_channels, 3, 3),
                           minval=-bound, maxval=bound, dtype=jnp.float32)
    b = jax.random.uniform(kb, (cout_total,), minval=-bound, maxval=bound,
                           dtype=jnp.float32)

    out = upsample_forward(x, w, b, upscale)
    out = jax.block_until_ready(out)

    ref = jax.block_until_ready(_reference(x, w, b, upscale))
    assert out.shape == (N, out_channels, H * upscale, W * upscale), out.shape
    assert jnp.allclose(out, ref, atol=1e-4, rtol=1e-4), float(
        jnp.max(jnp.abs(out - ref)))

    print("KERNEL_OK")
</pallas_src>

<mosaic_0001>
module attributes {stable_mosaic.version = 11 : i64} {
  func.func @_conv3x3_im2col_kernel(%arg0: i32, %arg1: memref<2x4x256xf32, #tpu.memory_space<vmem>>, %arg2: memref<16x80xf32, #tpu.memory_space<vmem>>, %arg3: memref<2x16x256xf32, #tpu.memory_space<vmem>>, %arg4: memref<8x768xf32, #tpu.memory_space<vmem>>, %arg5: memref<80x512xf32, #tpu.memory_space<vmem>>) attributes {dimension_semantics = [#tpu.dimension_semantics<arbitrary>], iteration_bounds = array<i64: 1>, scalar_prefetch = 0 : i64, scratch_operands = 2 : i64, tpu.core_type = #tpu.core_type<tc>, window_params = [{pipeline_mode = #tpu.pipeline_mode<synchronous>, transform_indices = @transform_0, window_bounds = array<i64: 2, 4, 256>}, {pipeline_mode = #tpu.pipeline_mode<synchronous>, transform_indices = @transform_1, window_bounds = array<i64: 16, 80>}, {pipeline_mode = #tpu.pipeline_mode<synchronous>, transform_indices = @transform_2, window_bounds = array<i64: 2, 16, 256>}]} {
    %cst = arith.constant 0.000000e+00 : f32
    %0 = vector.broadcast %cst : f32 to vector<8x768xf32>
    %c0 = arith.constant 0 : index
    %c0_0 = arith.constant 0 : index
    %1 = vector.load %arg4[%c0, %c0_0] : memref<8x768xf32, #tpu.memory_space<vmem>>, vector<8x768xf32>
    tpu.vector_store %arg4[%c0, %c0_0], %0 {strides = array<i32>} : memref<8x768xf32, #tpu.memory_space<vmem>>, vector<8x768xf32>,
    %c0_1 = arith.constant 0 : index
    %c0_2 = arith.constant 0 : index
    %c0_3 = arith.constant 0 : index
    %2 = vector.load %arg1[%c0_1, %c0_2, %c0_3] : memref<2x4x256xf32, #tpu.memory_space<vmem>>, vector<1x4x256xf32>
    %3 = vector.shape_cast %2 : vector<1x4x256xf32> to vector<4x256xf32>
    %c0_4 = arith.constant 0 : index
    %c128 = arith.constant 128 : index
    %4 = vector.load %arg4[%c0_4, %c128] : memref<8x768xf32, #tpu.memory_space<vmem>>, vector<4x256xf32>
    tpu.vector_store %arg4[%c0_4, %c128], %3 {strides = array<i32>} : memref<8x768xf32, #tpu.memory_space<vmem>>, vector<4x256xf32>,
    %c1 = arith.constant 1 : index
    %c0_5 = arith.constant 0 : index
    %c0_6 = arith.constant 0 : index
    %5 = vector.load %arg1[%c1, %c0_5, %c0_6] : memref<2x4x256xf32, #tpu.memory_space<vmem>>, vector<1x4x256xf32>
    %6 = vector.shape_cast %5 : vector<1x4x256xf32> to vector<4x256xf32>
    %c0_7 = arith.constant 0 : index
    %c384 = arith.constant 384 : index
    %7 = vector.load %arg4[%c0_7, %c384] : memref<8x768xf32, #tpu.memory_space<vmem>>, vector<4x256xf32>
    tpu.vector_store %arg4[%c0_7, %c384], %6 {strides = array<i32>} : memref<8x768xf32, #tpu.memory_space<vmem>>, vector<4x256xf32>,
    %8 = tpu.iota {dimensions = array<i32: 1>} : vector<8x512xi32>
    %c15_i32 = arith.constant 15 : i32
    %9 = vector.broadcast %c15_i32 : i32 to vector<8x512xi32>
    %10 = arith.andi %8, %9 : vector<8x512xi32>
    %c255_i32 = arith.constant 255 : i32
    %11 = vector.broadcast %c255_i32 : i32 to vector<8x512xi32>
    %12 = arith.andi %8, %11 : vector<8x512xi32>
    %c4_i32 = arith.constant 4 : i32
    %13 = vector.broadcast %c4_i32 : i32 to vector<8x512xi32>
    %14 = arith.shrsi %12, %13 : vector<8x512xi32>
    %c0_i32 = arith.constant 0 : i32
    %15 = vector.broadcast %c0_i32 : i32 to vector<8x512xi32>
    %16 = arith.cmpi ne, %10, %15 : vector<8x512xi32>
    %c15_i32_8 = arith.constant 15 : i32
    %17 = vector.broadcast %c15_i32_8 : i32 to vector<8x512xi32>
    %18 = arith.cmpi ne, %10, %17 : vector<8x512xi32>
    %c0_i32_9 = arith.constant 0 : i32
    %19 = vector.broadcast %c0_i32_9 : i32 to vector<8x512xi32>
    %20 = arith.cmpi ne, %14, %19 : vector<8x512xi32>
    %c15_i32_10 = arith.constant 15 : i32
    %21 = vector.broadcast %c15_i32_10 : i32 to vector<8x512xi32>
    %22 = arith.cmpi ne, %14, %21 : vector<8x512xi32>
    %c0_11 = arith.constant 0 : index
    %c111 = arith.constant 111 : index
    %23 = vector.load %arg4[%c0_11, %c111] : memref<8x768xf32, #tpu.memory_space<vmem>>, vector<8x512xf32>
    %24 = arith.andi %16, %20 : vector<8x512xi1>
    %cst_12 = arith.constant 0.000000e+00 : f32
    %25 = vector.broadcast %cst_12 : f32 to vector<8x512xf32>
    %26 = arith.select %24, %23, %25 : vector<8x512xi1>, vector<8x512xf32>
    %c0_13 = arith.constant 0 : index
    %c0_14 = arith.constant 0 : index
    %27 = vector.load %arg5[%c0_13, %c0_14] : memref<80x512xf32, #tpu.memory_space<vmem>>, vector<8x512xf32>
    tpu.vector_store %arg5[%c0_13, %c0_14], %26 {strides = array<i32>} : memref<80x512xf32, #tpu.memory_space<vmem>>, vector<8x512xf32>,
    %c0_15 = arith.constant 0 : index
    %c112 = arith.constant 112 : index
    %28 = vector.load %arg4[%c0_15, %c112] : memref<8x768xf32, #tpu.memory_space<vmem>>, vector<8x512xf32>
    %cst_16 = arith.constant 0.000000e+00 : f32
    %29 = vector.broadcast %cst_16 : f32 to vector<8x512xf32>
    %30 = arith.select %20, %28, %29 : vector<8x512xi1>, vector<8x512xf32>
    %c8 = arith.constant 8 : index
    %c0_17 = arith.constant 0 : index
    %31 = vector.load %arg5[%c8, %c0_17] : memref<80x512xf32, #tpu.memory_space<vmem>>, vector<8x512xf32>
    tpu.vector_store %arg5[%c8, %c0_17], %30 {strides = array<i32>} : memref<80x512xf32, #tpu.memory_space<vmem>>, vector<8x512xf32>,
    %c0_18 = arith.constant 0 : index
    %c113 = arith.constant 113 : index
    %32 = vector.load %arg4[%c0_18, %c113] : memref<8x768xf32, #tpu.memory_space<vmem>>, vector<8x512xf32>
    %33 = arith.andi %18, %20 : vector<8x512xi1>
    %cst_19 = arith.constant 0.000000e+00 : f32
    %34 = vector.broadcast %cst_19 : f32 to vector<8x512xf32>
    %35 = arith.select %33, %32, %34 : vector<8x512xi1>, vector<8x512xf32>
    %c16 = arith.constant 16 : index
    %c0_20 = arith.constant 0 : index
    %36 = vector.load %arg5[%c16, %c0_20] : memref<80x512xf32, #tpu.memory_space<vmem>>, vector<8x512xf32>
    tpu.vector_store %arg5[%c16, %c0_20], %35 {strides = array<i32>} : memref<80x512xf32, #tpu.memory_space<vmem>>, vector<8x512xf32>,
    %c0_21 = arith.constant 0 : index
    %c127 = arith.constant 127 : index
    %37 = vector.load %arg4[%c0_21, %c127] : memref<8x768xf32, #tpu.memory_space<vmem>>, vector<8x512xf32>
    %cst_22 = arith.constant 0.000000e+00 : f32
    %38 = vector.broadcast %cst_22 : f32 to vector<8x512xf32>
    %39 = arith.select %16, %37, %38 : vector<8x512xi1>, vector<8x512xf32>
    %c24 = arith.constant 24 : index
    %c0_23 = arith.constant 0 : index
    %40 = vector.load %arg5[%c24, %c0_23] : memref<80x512xf32, #tpu.memory_space<vmem>>, vector<8x512xf32>
    tpu.vector_store %arg5[%c24, %c0_23], %39 {strides = array<i32>} : memref<80x512xf32, #tpu.memory_space<vmem>>, vector<8x512xf32>,
    %c0_24 = arith.constant 0 : index
    %c128_25 = arith.constant 128 : index
    %41 = vector.load %arg4[%c0_24, %c128_25] : memref<8x768xf32, #tpu.memory_space<vmem>>, vector<8x512xf32>
    %c32 = arith.constant 32 : index
    %c0_26 = arith.constant 0 : index
    %42 = vector.load %arg5[%c32, %c0_26] : memref<80x512xf32, #tpu.memory_space<vmem>>, vector<8x512xf32>
    tpu.vector_store %arg5[%c32, %c0_26], %41 {strides = array<i32>} : memref<80x512xf32, #tpu.memory_space<vmem>>, vector<8x512xf32>,
    %c0_27 = arith.constant 0 : index
    %c129 = arith.constant 129 : index
    %43 = vector.load %arg4[%c0_27, %c129] : memref<8x768xf32, #tpu.memory_space<vmem>>, vector<8x512xf32>
    %cst_28 = arith.constant 0.000000e+00 : f32
    %44 = vector.broadcast %cst_28 : f32 to vector<8x512xf32>
    %45 = arith.select %18, %43, %44 : vector<8x512xi1>, vector<8x512xf32>
    %c40 = arith.constant 40 : index
    %c0_29 = arith.constant 0 : index
    %46 = vector.load %arg5[%c40, %c0_29] : memref<80x512xf32, #tpu.memory_space<vmem>>, vector<8x512xf32>
    tpu.vector_store %arg5[%c40, %c0_29], %45 {strides = array<i32>} : memref<80x512xf32, #tpu.memory_space<vmem>>, vector<8x512xf32>,
    %c0_30 = arith.constant 0 : index
    %c143 = arith.constant 143 : index
    %47 = vector.load %arg4[%c0_30, %c143] : memref<8x768xf32, #tpu.memory_space<vmem>>, vector<8x512xf32>
    %48 = arith.andi %16, %22 : vector<8x512xi1>
    %cst_31 = arith.constant 0.000000e+00 : f32
    %49 = vector.broadcast %cst_31 : f32 to vector<8x512xf32>
    %50 = arith.select %48, %47, %49 : vector<8x512xi1>, vector<8x512xf32>
    %c48 = arith.constant 48 : index
    %c0_32 = arith.constant 0 : index
    %51 = vector.load %arg5[%c48, %c0_32] : memref<80x512xf32, #tpu.memory_space<vmem>>, vector<8x512xf32>
    tpu.vector_store %arg5[%c48, %c0_32], %50 {strides = array<i32>} : memref<80x512xf32, #tpu.memory_space<vmem>>, vector<8x512xf32>,
    %c0_33 = arith.constant 0 : index
    %c144 = arith.constant 144 : index
    %52 = vector.load %arg4[%c0_33, %c144] : memref<8x768xf32, #tpu.memory_space<vmem>>, vector<8x512xf32>
    %cst_34 = arith.constant 0.000000e+00 : f32
    %53 = vector.broadcast %cst_34 : f32 to vector<8x512xf32>
    %54 = arith.select %22, %52, %53 : vector<8x512xi1>, vector<8x512xf32>
    %c56 = arith.constant 56 : index
    %c0_35 = arith.constant 0 : index
    %55 = vector.load %arg5[%c56, %c0_35] : memref<80x512xf32, #tpu.memory_space<vmem>>, vector<8x512xf32>
    tpu.vector_store %arg5[%c56, %c0_35], %54 {strides = array<i32>} : memref<80x512xf32, #tpu.memory_space<vmem>>, vector<8x512xf32>,
    %c0_36 = arith.constant 0 : index
    %c145 = arith.constant 145 : index
    %56 = vector.load %arg4[%c0_36, %c145] : memref<8x768xf32, #tpu.memory_space<vmem>>, vector<8x512xf32>
    %57 = arith.andi %18, %22 : vector<8x512xi1>
    %cst_37 = arith.constant 0.000000e+00 : f32
    %58 = vector.broadcast %cst_37 : f32 to vector<8x512xf32>
    %59 = arith.select %57, %56, %58 : vector<8x512xi1>, vector<8x512xf32>
    %c64 = arith.constant 64 : index
    %c0_38 = arith.constant 0 : index
    %60 = vector.load %arg5[%c64, %c0_38] : memref<80x512xf32, #tpu.memory_space<vmem>>, vector<8x512xf32>
    tpu.vector_store %arg5[%c64, %c0_38], %59 {strides = array<i32>} : memref<80x512xf32, #tpu.memory_space<vmem>>, vector<8x512xf32>,
    %61 = tpu.iota {dimensions = array<i32: 0>} : vector<8x512xi32>
    %c0_i32_39 = arith.constant 0 : i32
    %62 = vector.broadcast %c0_i32_39 : i32 to vector<8x512xi32>
    %63 = arith.cmpi eq, %61, %62 : vector<8x512xi32>
    %cst_40 = arith.constant 1.000000e+00 : f32
    %cst_41 = arith.constant 0.000000e+00 : f32
    %64 = vector.broadcast %cst_40 : f32 to vector<8x512xf32>
    %65 = vector.broadcast %cst_41 : f32 to vector<8x512xf32>
    %66 = arith.select %63, %64, %65 : vector<8x512xi1>, vector<8x512xf32>
    %c72 = arith.constant 72 : index
    %c0_42 = arith.constant 0 : index
    %67 = vector.load %arg5[%c72, %c0_42] : memref<80x512xf32, #tpu.memory_space<vmem>>, vector<8x512xf32>
    tpu.vector_store %arg5[%c72, %c0_42], %66 {strides = array<i32>} : memref<80x512xf32, #tpu.memory_space<vmem>>, vector<8x512xf32>,
    %c0_43 = arith.constant 0 : index
    %c0_44 = arith.constant 0 : index
    %68 = vector.load %arg2[%c0_43, %c0_44] : memref<16x80xf32, #tpu.memory_space<vmem>>, vector<16x80xf32>
    %c0_45 = arith.constant 0 : index
    %c0_46 = arith.constant 0 : index
    %69 = vector.load %arg5[%c0_45, %c0_46] : memref<80x512xf32, #tpu.memory_space<vmem>>, vector<80x512xf32>
    %cst_47 = arith.constant dense<0.000000e+00> : vector<16x512xf32>
    %70 = tpu.matmul %68, %69, %cst_47 {dimension_numbers = #tpu.dot_dimension_numbers<[1], [0], [0], [1], [0, 0, 1, 1], [], []>} : vector<16x80xf32>, vector<80x512xf32>, vector<16x512xf32> -> vector<16x512xf32>
    %71 = vector.extract_strided_slice %70 {offsets = [0, 0], sizes = [16, 256], strides = [1, 1]} : vector<16x512xf32> to vector<16x256xf32>
    %c0_48 = arith.constant 0 : index
    %c0_49 = arith.constant 0 : index
    %c0_50 = arith.constant 0 : index
    %72 = vector.load %arg3[%c0_48, %c0_49, %c0_50] : memref<2x16x256xf32, #tpu.memory_space<vmem>>, vector<1x16x256xf32>
    %73 = vector.shape_cast %72 : vector<1x16x256xf32> to vector<16x256xf32>
    %74 = vector.shape_cast %71 : vector<16x256xf32> to vector<1x16x256xf32>
    tpu.vector_store %arg3[%c0_48, %c0_49, %c0_50], %74 {strides = array<i32>} : memref<2x16x256xf32, #tpu.memory_space<vmem>>, vector<1x16x256xf32>,
    %75 = vector.extract_strided_slice %70 {offsets = [0, 256], sizes = [16, 256], strides = [1, 1]} : vector<16x512xf32> to vector<16x256xf32>
    %c1_51 = arith.constant 1 : index
    %c0_52 = arith.constant 0 : index
    %c0_53 = arith.constant 0 : index
    %76 = vector.load %arg3[%c1_51, %c0_52, %c0_53] : memref<2x16x256xf32, #tpu.memory_space<vmem>>, vector<1x16x256xf32>
    %77 = vector.shape_cast %76 : vector<1x16x256xf32> to vector<16x256xf32>
    %78 = vector.shape_cast %75 : vector<16x256xf32> to vector<1x16x256xf32>
    tpu.vector_store %arg3[%c1_51, %c0_52, %c0_53], %78 {strides = array<i32>} : memref<2x16x256xf32, #tpu.memory_space<vmem>>, vector<1x16x256xf32>,
    return
  }
  func.func @transform_0(%arg0: i32) -> (i32, i32, i32) {
    %c0_i32 = arith.constant 0 : i32
    %c0_i32_0 = arith.constant 0 : i32
    %c0_i32_1 = arith.constant 0 : i32
    %c0_i32_2 = arith.constant 0 : i32
    return %c0_i32, %c0_i32_0, %c0_i32_1 : i32, i32, i32
  }
  func.func @transform_1(%arg0: i32) -> (i32, i32) {
    %c0_i32 = arith.constant 0 : i32
    %c0_i32_0 = arith.constant 0 : i32
    %c0_i32_1 = arith.constant 0 : i32
    return %c0_i32, %c0_i32_0 : i32, i32
  }
  func.func @transform_2(%arg0: i32) -> (i32, i32, i32) {
    %c0_i32 = arith.constant 0 : i32
    %c0_i32_0 = arith.constant 0 : i32
    %c0_i32_1 = arith.constant 0 : i32
    %c0_i32_2 = arith.constant 0 : i32
    return %c0_i32, %c0_i32_0, %c0_i32_1 : i32, i32, i32
  }
}

</mosaic_0001>

<llo_original>
// kernel: upsample_forward.1
$region0: #{upsample_forward.1}
  #allocation0 [shape = 'u32[]', space=smem, size = 0x4, offset = 0x4, fixed_abs, tag = 'smem constant byte address 0x4 - core index']
  #allocation1 [shape = 'u32[144,128]{1,0:T(1,128)}', space=vmem, size = 0x12000, scoped, tag = 'internal scratch']
  #allocation2 [shape = 'f32[8,768]{1,0:T(8,128)}', space=vmem, size = 0x6000, scoped, tag = 'scratch operand']
  #allocation3 [shape = 'f32[80,512]{1,0:T(8,128)}', space=vmem, size = 0x28000, scoped, tag = 'scratch operand']
  %s0 = inlined_call_operand.vmem [shape: f32[2,4,256], index: 0, kind: input, shape index: {}]
  %s1 = inlined_call_operand.vmem [shape: f32[16,80], index: 1, kind: input, shape index: {}]
  %s2 = inlined_call_operand.vmem [shape: f32[2,16,256], index: 2, kind: output, shape index: {}]
  %s3 = sld [smem:[#allocation0]]
  $region18: #{upsample_forward.1} parent=0
    _
  %s5 = ssub.s32 1, %s3
  %s6 = scalar_select 0, %s5, %s3
  // Predicated region
  $region2: #{upsample_forward.1} parent=0 // pred_check
    _
  $region3: #{upsample_forward.1} parent=0 // pred_check_branch
    %8 = sbr.rel (0) target = $region5
  $region4: #{upsample_forward.1} parent=0 // pred_region
    _
  $region5: #{upsample_forward.1} parent=0 // pred_fallthru
    _
  // Predicated region
  $region6: #{upsample_forward.1} parent=0 // pred_check
    _
  $region7: #{upsample_forward.1} parent=0 // pred_check_branch
    %10 = sbr.rel (0) target = $region9
  $region8: #{upsample_forward.1} parent=0 // pred_region
    _
  $region9: #{upsample_forward.1} parent=0 // pred_fallthru
    _
  %11 = vst [vmem:[#allocation2] sm:$0xff] 0.0
  %12 = vst [vmem:[#allocation2 + $0x8] sm:$0xff] 0.0
  %13 = vst [vmem:[#allocation2 + $0x10] sm:$0xff] 0.0
  %14 = vst [vmem:[#allocation2 + $0x18] sm:$0xff] 0.0
  %15 = vst [vmem:[#allocation2 + $0x20] sm:$0xff] 0.0
  %16 = vst [vmem:[#allocation2 + $0x28] sm:$0xff] 0.0
  %v17 = vld [vmem:[%s0] sm:$0xff]
  %v19 = vcombine.high %v17, %v17
  %21 = vst [vmem:[#allocation2 + $0x8] sm:$0xf] %v17
  %22 = vst [vmem:[#allocation2 + $0x10] sm:$0xf] %v19
  %s23 = scalar_lea.vmem %s0, 8
  %v24 = vld [vmem:[%s23] sm:$0xff]
  %v26 = vcombine.high %v24, %v24
  %28 = vst [vmem:[#allocation2 + $0x18] sm:$0xf] %v24
  %29 = vst [vmem:[#allocation2 + $0x20] sm:$0xf] %v26
  %v30 = vlaneseq
  %v31 = vand.u32 %v30, 127
  %v32 = vadd.s32 %v31, 128
  %v33 = vadd.s32 %v31, 256
  %v34 = vadd.s32 %v31, 384
  %v35 = vand.u32 %v31, 15
  %v36 = vand.u32 %v32, 15
  %v37 = vand.u32 %v33, 15
  %v38 = vand.u32 %v34, 15
  %v39 = vand.u32 %v31, 255
  %v40 = vand.u32 %v32, 255
  %v41 = vand.u32 %v33, 255
  %v42 = vand.u32 %v34, 255
  %v43 = vshra.s32 %v39, 4
  %v44 = vshra.s32 %v40, 4
  %v45 = vshra.s32 %v41, 4
  %v46 = vshra.s32 %v42, 4
  %vm47 = vcmp.ne.s32.totalorder %v35, 0
  %vm48 = vcmp.ne.s32.totalorder %v36, 0
  %vm49 = vcmp.ne.s32.totalorder %v37, 0
  %vm50 = vcmp.ne.s32.totalorder %v38, 0
  %vm51 = vcmp.ne.s32.totalorder %v35, 15
  %vm52 = vcmp.ne.s32.totalorder %v36, 15
  %vm53 = vcmp.ne.s32.totalorder %v37, 15
  %vm54 = vcmp.ne.s32.totalorder %v38, 15
  %vm55 = vcmp.ne.s32.totalorder %v43, 0
  %vm56 = vcmp.ne.s32.totalorder %v44, 0
  %vm57 = vcmp.ne.s32.totalorder %v45, 0
  %vm58 = vcmp.ne.s32.totalorder %v46, 0
  %vm59 = vcmp.ne.s32.totalorder %v43, 15
  %vm60 = vcmp.ne.s32.totalorder %v44, 15
  %vm61 = vcmp.ne.s32.totalorder %v45, 15
  %vm62 = vcmp.ne.s32.totalorder %v46, 15
  %v63 = vld [vmem:[#allocation2] sm:$0xff]
  %v64 = vld [vmem:[#allocation2 + $0x8] sm:$0xff]
  %v65 = vld [vmem:[#allocation2 + $0x10] sm:$0xff]
  %v66 = vld [vmem:[#allocation2 + $0x18] sm:$0xff]
  %v67 = vld [vmem:[#allocation2 + $0x20] sm:$0xff]
  %vm68 = vmand %vm47, %vm55
  %vm69 = vmand %vm48, %vm56
  %vm70 = vmand %vm49, %vm57
  %vm71 = vmand %vm50, %vm58
  %77 = vrot.lane.b32.xlu0 %v63, 17
  %v78 = vpop.permute.xlu0 %77
  %79 = vrot.lane.b32.xlu0 %v64, 17
  %v80 = vpop.permute.xlu0 %79
  %81 = vrot.lane.b32.xlu0 %v65, 17
  %v82 = vpop.permute.xlu0 %81
  %83 = vrot.lane.b32.xlu0 %v66, 17
  %v84 = vpop.permute.xlu0 %83
  %85 = vrot.lane.b32.xlu0 %v67, 17
  %v86 = vpop.permute.xlu0 %85
  %vm87 = vcmask 138240
  %v88 = vsel %vm87, %v78, %v80
  %v89 = vsel %vm87, %v80, %v82
  %v90 = vsel %vm87, %v82, %v84
  %v91 = vsel %vm87, %v84, %v86
  %v96 = vsel %vm68, %v88, 0.0
  %v97 = vsel %vm69, %v89, 0.0
  %v98 = vsel %vm70, %v90, 0.0
  %v99 = vsel %vm71, %v91, 0.0
  %100 = vst [vmem:[#allocation3] sm:$0xff] %v96
  %101 = vst [vmem:[#allocation3 + $0x8] sm:$0xff] %v97
  %102 = vst [vmem:[#allocation3 + $0x10] sm:$0xff] %v98
  %103 = vst [vmem:[#allocation3 + $0x18] sm:$0xff] %v99
  %v104 = vld [vmem:[#allocation2] sm:$0xff]
  %v105 = vld [vmem:[#allocation2 + $0x8] sm:$0xff]
  %v106 = vld [vmem:[#allocation2 + $0x10] sm:$0xff]
  %v107 = vld [vmem:[#allocation2 + $0x18] sm:$0xff]
  %v108 = vld [vmem:[#allocation2 + $0x20] sm:$0xff]
  %114 = vrot.lane.b32.xlu0 %v104, 16
  %v115 = vpop.permute.xlu0 %114
  %116 = vrot.lane.b32.xlu0 %v105, 16
  %v117 = vpop.permute.xlu0 %116
  %118 = vrot.lane.b32.xlu0 %v106, 16
  %v119 = vpop.permute.xlu0 %118
  %120 = vrot.lane.b32.xlu0 %v107, 16
  %v121 = vpop.permute.xlu0 %120
  %122 = vrot.lane.b32.xlu0 %v108, 16
  %v123 = vpop.permute.xlu0 %122
  %vm124 = vcmask 130048
  %v125 = vsel %vm124, %v115, %v117
  %v126 = vsel %vm124, %v117, %v119
  %v127 = vsel %vm124, %v119, %v121
  %v128 = vsel %vm124, %v121, %v123
  %v133 = vsel %vm55, %v125, 0.0
  %v134 = vsel %vm56, %v126, 0.0
  %v135 = vsel %vm57, %v127, 0.0
  %v136 = vsel %vm58, %v128, 0.0
  %137 = vst [vmem:[#allocation3 + $0x20] sm:$0xff] %v133
  %138 = vst [vmem:[#allocation3 + $0x28] sm:$0xff] %v134
  %139 = vst [vmem:[#allocation3 + $0x30] sm:$0xff] %v135
  %140 = vst [vmem:[#allocation3 + $0x38] sm:$0xff] %v136
  %v141 = vld [vmem:[#allocation2] sm:$0xff]
  %v142 = vld [vmem:[#allocation2 + $0x8] sm:$0xff]
  %v143 = vld [vmem:[#allocation2 + $0x10] sm:$0xff]
  %v144 = vld [vmem:[#allocation2 + $0x18] sm:$0xff]
  %v145 = vld [vmem:[#allocation2 + $0x20] sm:$0xff]
  %vm146 = vmand %vm51, %vm55
  %vm147 = vmand %vm52, %vm56
  %vm148 = vmand %vm53, %vm57
  %vm149 = vmand %vm54, %vm58
  %155 = vrot.lane.b32.xlu0 %v141, 15
  %v156 = vpop.permute.xlu0 %155
  %157 = vrot.lane.b32.xlu0 %v142, 15
  %v158 = vpop.permute.xlu0 %157
  %159 = vrot.lane.b32.xlu0 %v143, 15
  %v160 = vpop.permute.xlu0 %159
  %161 = vrot.lane.b32.xlu0 %v144, 15
  %v162 = vpop.permute.xlu0 %161
  %163 = vrot.lane.b32.xlu0 %v145, 15
  %v164 = vpop.permute.xlu0 %163
  %vm165 = vcmask 121856
  %v166 = vsel %vm165, %v156, %v158
  %v167 = vsel %vm165, %v158, %v160
  %v168 = vsel %vm165, %v160, %v162
  %v169 = vsel %vm165, %v162, %v164
  %v174 = vsel %vm146, %v166, 0.0
  %v175 = vsel %vm147, %v167, 0.0
  %v176 = vsel %vm148, %v168, 0.0
  %v177 = vsel %vm149, %v169, 0.0
  %178 = vst [vmem:[#allocation3 + $0x40] sm:$0xff] %v174
  %179 = vst [vmem:[#allocation3 + $0x48] sm:$0xff] %v175
  %180 = vst [vmem:[#allocation3 + $0x50] sm:$0xff] %v176
  %181 = vst [vmem:[#allocation3 + $0x58] sm:$0xff] %v177
  %v182 = vld [vmem:[#allocation2] sm:$0xff]
  %v183 = vld [vmem:[#allocation2 + $0x8] sm:$0xff]
  %v184 = vld [vmem:[#allocation2 + $0x10] sm:$0xff]
  %v185 = vld [vmem:[#allocation2 + $0x18] sm:$0xff]
  %v186 = vld [vmem:[#allocation2 + $0x20] sm:$0xff]
  %192 = vrot.lane.b32.xlu0 %v182, 1
  %v193 = vpop.permute.xlu0 %192
  %194 = vrot.lane.b32.xlu0 %v183, 1
  %v195 = vpop.permute.xlu0 %194
  %196 = vrot.lane.b32.xlu0 %v184, 1
  %v197 = vpop.permute.xlu0 %196
  %198 = vrot.lane.b32.xlu0 %v185, 1
  %v199 = vpop.permute.xlu0 %198
  %200 = vrot.lane.b32.xlu0 %v186, 1
  %v201 = vpop.permute.xlu0 %200
  %vm202 = vcmask 7168
  %v203 = vsel %vm202, %v193, %v195
  %v204 = vsel %vm202, %v195, %v197
  %v205 = vsel %vm202, %v197, %v199
  %v206 = vsel %vm202, %v199, %v201
  %v211 = vsel %vm47, %v203, 0.0
  %v212 = vsel %vm48, %v204, 0.0
  %v213 = vsel %vm49, %v205, 0.0
  %v214 = vsel %vm50, %v206, 0.0
  %215 = vst [vmem:[#allocation3 + $0x60] sm:$0xff] %v211
  %216 = vst [vmem:[#allocation3 + $0x68] sm:$0xff] %v212
  %217 = vst [vmem:[#allocation3 + $0x70] sm:$0xff] %v213
  %218 = vst [vmem:[#allocation3 + $0x78] sm:$0xff] %v214
  %v219 = vld [vmem:[#allocation2 + $0x8] sm:$0xff]
  %v220 = vld [vmem:[#allocation2 + $0x10] sm:$0xff]
  %v221 = vld [vmem:[#allocation2 + $0x18] sm:$0xff]
  %v222 = vld [vmem:[#allocation2 + $0x20] sm:$0xff]
  %223 = vst [vmem:[#allocation3 + $0x80] sm:$0xff] %v219
  %224 = vst [vmem:[#allocation3 + $0x88] sm:$0xff] %v220
  %225 = vst [vmem:[#allocation3 + $0x90] sm:$0xff] %v221
  %226 = vst [vmem:[#allocation3 + $0x98] sm:$0xff] %v222
  %v227 = vld [vmem:[#allocation2 + $0x8] sm:$0xff]
  %v228 = vld [vmem:[#allocation2 + $0x10] sm:$0xff]
  %v229 = vld [vmem:[#allocation2 + $0x18] sm:$0xff]
  %v230 = vld [vmem:[#allocation2 + $0x20] sm:$0xff]
  %v231 = vld [vmem:[#allocation2 + $0x28] sm:$0xff]
  %237 = vrot.lane.b32.xlu0 %v227, 127
  %v238 = vpop.permute.xlu0 %237
  %239 = vrot.lane.b32.xlu0 %v228, 127
  %v240 = vpop.permute.xlu0 %239
  %241 = vrot.lane.b32.xlu0 %v229, 127
  %v242 = vpop.permute.xlu0 %241
  %243 = vrot.lane.b32.xlu0 %v230, 127
  %v244 = vpop.permute.xlu0 %243
  %245 = vrot.lane.b32.xlu0 %v231, 127
  %v246 = vpop.permute.xlu0 %245
  %vm247 = vcmask 1039360
  %v248 = vsel %vm247, %v238, %v240
  %v249 = vsel %vm247, %v240, %v242
  %v250 = vsel %vm247, %v242, %v244
  %v251 = vsel %vm247, %v244, %v246
  %v256 = vsel %vm51, %v248, 0.0
  %v257 = vsel %vm52, %v249, 0.0
  %v258 = vsel %vm53, %v250, 0.0
  %v259 = vsel %vm54, %v251, 0.0
  %260 = vst [vmem:[#allocation3 + $0xa0] sm:$0xff] %v256
  %261 = vst [vmem:[#allocation3 + $0xa8] sm:$0xff] %v257
  %262 = vst [vmem:[#allocation3 + $0xb0] sm:$0xff] %v258
  %263 = vst [vmem:[#allocation3 + $0xb8] sm:$0xff] %v259
  %v264 = vld [vmem:[#allocation2 + $0x8] sm:$0xff]
  %v265 = vld [vmem:[#allocation2 + $0x10] sm:$0xff]
  %v266 = vld [vmem:[#allocation2 + $0x18] sm:$0xff]
  %v267 = vld [vmem:[#allocation2 + $0x20] sm:$0xff]
  %v268 = vld [vmem:[#allocation2 + $0x28] sm:$0xff]
  %vm269 = vmand %vm47, %vm59
  %vm270 = vmand %vm48, %vm60
  %vm271 = vmand %vm49, %vm61
  %vm272 = vmand %vm50, %vm62
  %278 = vrot.lane.b32.xlu0 %v264, 113
  %v279 = vpop.permute.xlu0 %278
  %280 = vrot.lane.b32.xlu0 %v265, 113
  %v281 = vpop.permute.xlu0 %280
  %282 = vrot.lane.b32.xlu0 %v266, 113
  %v283 = vpop.permute.xlu0 %282
  %284 = vrot.lane.b32.xlu0 %v267, 113
  %v285 = vpop.permute.xlu0 %284
  %286 = vrot.lane.b32.xlu0 %v268, 113
  %v287 = vpop.permute.xlu0 %286
  %vm288 = vcmask 924672
  %v289 = vsel %vm288, %v279, %v281
  %v290 = vsel %vm288, %v281, %v283
  %v291 = vsel %vm288, %v283, %v285
  %v292 = vsel %vm288, %v285, %v287
  %v297 = vsel %vm269, %v289, 0.0
  %v298 = vsel %vm270, %v290, 0.0
  %v299 = vsel %vm271, %v291, 0.0
  %v300 = vsel %vm272, %v292, 0.0
  %301 = vst [vmem:[#allocation3 + $0xc0] sm:$0xff] %v297
  %302 = vst [vmem:[#allocation3 + $0xc8] sm:$0xff] %v298
  %303 = vst [vmem:[#allocation3 + $0xd0] sm:$0xff] %v299
  %304 = vst [vmem:[#allocation3 + $0xd8] sm:$0xff] %v300
  %v305 = vld [vmem:[#allocation2 + $0x8] sm:$0xff]
  %v306 = vld [vmem:[#allocation2 + $0x10] sm:$0xff]
  %v307 = vld [vmem:[#allocation2 + $0x18] sm:$0xff]
  %v308 = vld [vmem:[#allocation2 + $0x20] sm:$0xff]
  %v309 = vld [vmem:[#allocation2 + $0x28] sm:$0xff]
  %315 = vrot.lane.b32.xlu0 %v305, 112
  %v316 = vpop.permute.xlu0 %315
  %317 = vrot.lane.b32.xlu0 %v306, 112
  %v318 = vpop.permute.xlu0 %317
  %319 = vrot.lane.b32.xlu0 %v307, 112
  %v320 = vpop.permute.xlu0 %319
  %321 = vrot.lane.b32.xlu0 %v308, 112
  %v322 = vpop.permute.xlu0 %321
  %323 = vrot.lane.b32.xlu0 %v309, 112
  %v324 = vpop.permute.xlu0 %323
  %vm325 = vcmask 916480
  %v326 = vsel %vm325, %v316, %v318
  %v327 = vsel %vm325, %v318, %v320
  %v328 = vsel %vm325, %v320, %v322
  %v329 = vsel %vm325, %v322, %v324
  %v334 = vsel %vm59, %v326, 0.0
  %v335 = vsel %vm60, %v327, 0.0
  %v336 = vsel %vm61, %v328, 0.0
  %v337 = vsel %vm62, %v329, 0.0
  %338 = vst [vmem:[#allocation3 + $0xe0] sm:$0xff] %v334
  %339 = vst [vmem:[#allocation3 + $0xe8] sm:$0xff] %v335
  %340 = vst [vmem:[#allocation3 + $0xf0] sm:$0xff] %v336
  %341 = vst [vmem:[#allocation3 + $0xf8] sm:$0xff] %v337
  %v342 = vld [vmem:[#allocation2 + $0x8] sm:$0xff]
  %v343 = vld [vmem:[#allocation2 + $0x10] sm:$0xff]
  %v344 = vld [vmem:[#allocation2 + $0x18] sm:$0xff]
  %v345 = vld [vmem:[#allocation2 + $0x20] sm:$0xff]
  %v346 = vld [vmem:[#allocation2 + $0x28] sm:$0xff]
  %vm347 = vmand %vm51, %vm59
  %vm348 = vmand %vm52, %vm60
  %vm349 = vmand %vm53, %vm61
  %vm350 = vmand %vm54, %vm62
  %356 = vrot.lane.b32.xlu0 %v342, 111
  %v357 = vpop.permute.xlu0 %356
  %358 = vrot.lane.b32.xlu0 %v343, 111
  %v359 = vpop.permute.xlu0 %358
  %360 = vrot.lane.b32.xlu0 %v344, 111
  %v361 = vpop.permute.xlu0 %360
  %362 = vrot.lane.b32.xlu0 %v345, 111
  %v363 = vpop.permute.xlu0 %362
  %364 = vrot.lane.b32.xlu0 %v346, 111
  %v365 = vpop.permute.xlu0 %364
  %vm366 = vcmask 908288
  %v367 = vsel %vm366, %v357, %v359
  %v368 = vsel %vm366, %v359, %v361
  %v369 = vsel %vm366, %v361, %v363
  %v370 = vsel %vm366, %v363, %v365
  %v375 = vsel %vm347, %v367, 0.0
  %v376 = vsel %vm348, %v368, 0.0
  %v377 = vsel %vm349, %v369, 0.0
  %v378 = vsel %vm350, %v370, 0.0
  %379 = vst [vmem:[#allocation3 + $0x100] sm:$0xff] %v375
  %380 = vst [vmem:[#allocation3 + $0x108] sm:$0xff] %v376
  %381 = vst [vmem:[#allocation3 + $0x110] sm:$0xff] %v377
  %382 = vst [vmem:[#allocation3 + $0x118] sm:$0xff] %v378
  %v383 = vlaneseq
  %v384 = vshrl.u32 %v383, 7
  %vm385 = vcmp.eq.s32.totalorder %v384, 0
  %v386 = vsel %vm385, 1.0, 0.0
  %387 = vst [vmem:[#allocation3 + $0x120] sm:$0xff] %v386
  %388 = vst [vmem:[#allocation3 + $0x128] sm:$0xff] %v386
  %389 = vst [vmem:[#allocation3 + $0x130] sm:$0xff] %v386
  %390 = vst [vmem:[#allocation3 + $0x138] sm:$0xff] %v386
  %v391 = vld [vmem:[%s1] sm:$0xff]
  %v392 = vld [vmem:[%s1 + $0x8] sm:$0xff]
  %v393 = vld [vmem:[#allocation3] sm:$0xff]
  %v394 = vld [vmem:[#allocation3 + $0x8] sm:$0xff]
  %v395 = vld [vmem:[#allocation3 + $0x10] sm:$0xff]
  %v396 = vld [vmem:[#allocation3 + $0x18] sm:$0xff]
  %v397 = vld [vmem:[#allocation3 + $0x20] sm:$0xff]
  %v398 = vld [vmem:[#allocation3 + $0x28] sm:$0xff]
  %v399 = vld [vmem:[#allocation3 + $0x30] sm:$0xff]
  %v400 = vld [vmem:[#allocation3 + $0x38] sm:$0xff]
  %v401 = vld [vmem:[#allocation3 + $0x40] sm:$0xff]
  %v402 = vld [vmem:[#allocation3 + $0x48] sm:$0xff]
  %v403 = vld [vmem:[#allocation3 + $0x50] sm:$0xff]
  %v404 = vld [vmem:[#allocation3 + $0x58] sm:$0xff]
  %v405 = vld [vmem:[#allocation3 + $0x60] sm:$0xff]
  %v406 = vld [vmem:[#allocation3 + $0x68] sm:$0xff]
  %v407 = vld [vmem:[#allocation3 + $0x70] sm:$0xff]
  %v408 = vld [vmem:[#allocation3 + $0x78] sm:$0xff]
  %v409 = vld [vmem:[#allocation3 + $0x80] sm:$0xff]
  %v410 = vld [vmem:[#allocation3 + $0x88] sm:$0xff]
  %v411 = vld [vmem:[#allocation3 + $0x90] sm:$0xff]
  %v412 = vld [vmem:[#allocation3 + $0x98] sm:$0xff]
  %v413 = vld [vmem:[#allocation3 + $0xa0] sm:$0xff]
  %v414 = vld [vmem:[#allocation3 + $0xa8] sm:$0xff]
  %v415 = vld [vmem:[#allocation3 + $0xb0] sm:$0xff]
  %v416 = vld [vmem:[#allocation3 + $0xb8] sm:$0xff]
  %v417 = vld [vmem:[#allocation3 + $0xc0] sm:$0xff]
  %v418 = vld [vmem:[#allocation3 + $0xc8] sm:$0xff]
  %v419 = vld [vmem:[#allocation3 + $0xd0] sm:$0xff]
  %v420 = vld [vmem:[#allocation3 + $0xd8] sm:$0xff]
  %v421 = vld [vmem:[#allocation3 + $0xe0] sm:$0xff]
  %v422 = vld [vmem:[#allocation3 + $0xe8] sm:$0xff]
  %v423 = vld [vmem:[#allocation3 + $0xf0] sm:$0xff]
  %v424 = vld [vmem:[#allocation3 + $0xf8] sm:$0xff]
  %v425 = vld [vmem:[#allocation3 + $0x100] sm:$0xff]
  %v426 = vld [vmem:[#allocation3 + $0x108] sm:$0xff]
  %v427 = vld [vmem:[#allocation3 + $0x110] sm:$0xff]
  %v428 = vld [vmem:[#allocation3 + $0x118] sm:$0xff]
  %v429 = vld [vmem:[#allocation3 + $0x120] sm:$0xff]
  %v430 = vld [vmem:[#allocation3 + $0x128] sm:$0xff]
  %v431 = vld [vmem:[#allocation3 + $0x130] sm:$0xff]
  %v432 = vld [vmem:[#allocation3 + $0x138] sm:$0xff]
  %vm433 = vcmask 654336
  %v435 = vsel %vm433, %v391, 0
  %v438 = vsel %vm433, %v392, 0
  %440 = vmatprep.subr.mxu0 0.0
  %441 = vmatpush1.msra.mxu0 0.0
  %442 = vmatprep.subr.mxu0 0.0
  %443 = vmatpush1.msra.mxu0 0.0
  %444 = vmatprep.subr.mxu0 0.0
  %445 = vmatpush1.msra.mxu0 0.0
  %446 = vmatprep.subr.mxu0 0.0
  %447 = vmatpush1.msra.mxu0 0.0
  %448 = vmatprep.subr.mxu0 0.0
  %449 = vmatpush1.msra.mxu0 0.0
  %450 = vmatprep.subr.mxu0 0.0
  %451 = vmatpush1.msra.mxu0 0.0
  %452 = vmatprep.subr.mxu0 %v430
  %453 = vmatpush1.msra.mxu0 %v429
  %454 = vmatprep.subr.mxu0 %v426
  %455 = vmatpush1.msra.mxu0 %v425
  %456 = vmatprep.subr.mxu0 %v422
  %457 = vmatpush1.msra.mxu0 %v421
  %458 = vmatprep.subr.mxu0 %v418
  %459 = vmatpush1.msra.mxu0 %v417
  %460 = vmatprep.subr.mxu0 %v414
  %461 = vmatpush1.msra.mxu0 %v413
  %462 = vmatprep.subr.mxu0 %v410
  %463 = vmatpush1.msra.mxu0 %v409
  %464 = vmatprep.subr.mxu0 %v406
  %465 = vmatpush1.msra.mxu0 %v405
  %466 = vmatprep.subr.mxu0 %v402
  %467 = vmatpush1.msra.mxu0 %v401
  %468 = vmatprep.subr.mxu0 %v398
  %469 = vmatpush1.msra.mxu0 %v397
  %470 = vmatprep.subr.mxu0 %v394
  %471 = vmatpush1.msra.mxu0 %v393
  %472 = vmatprep.subr.mxu0 0.0
  %473 = vmatpush2.msra.mxu0 0.0
  %474 = vmatprep.subr.mxu0 0.0
  %475 = vmatpush2.msra.mxu0 0.0
  %476 = vmatprep.subr.mxu0 0.0
  %477 = vmatpush2.msra.mxu0 0.0
  %478 = vmatprep.subr.mxu0 0.0
  %479 = vmatpush2.msra.mxu0 0.0
  %480 = vmatprep.subr.mxu0 0.0
  %481 = vmatpush2.msra.mxu0 0.0
  %482 = vmatprep.subr.mxu0 0.0
  %483 = vmatpush2.msra.mxu0 0.0
  %484 = vmatprep.subr.mxu0 0.0
  %485 = vmatpush2.msra.mxu0 0.0
  %486 = vmatprep.subr.mxu0 0.0
  %487 = vmatpush2.msra.mxu0 0.0
  %488 = vmatprep.subr.mxu0 0.0
  %489 = vmatpush2.msra.mxu0 0.0
  %490 = vmatprep.subr.mxu0 0.0
  %491 = vmatpush2.msra.mxu0 0.0
  %492 = vmatprep.subr.mxu0 0.0
  %493 = vmatpush2.msra.mxu0 0.0
  %494 = vmatprep.subr.mxu0 0.0
  %495 = vmatpush2.msra.mxu0 0.0
  %496 = vmatprep.subr.mxu0 0.0
  %497 = vmatpush2.msra.mxu0 0.0
  %498 = vmatprep.subr.mxu0 0.0
  %499 = vmatpush2.msra.mxu0 0.0
  %500 = vmatprep.subr.mxu0 0.0
  %501 = vmatpush2.msra.mxu0 0.0
  %502 = vmatprep.subr.mxu0 0.0
  %503 = vmatpush2.msra.mxu0 0.0
  %504 = vmatprep.mubr.f32.mxu0 0.0
  %505 = vmatmul.mubr.f32.gmra.mxu0 %v435
  %v506 = vpop.f32.mrf.mxu0
  %v507 = vadd.f32 0.0, %v506
  %v508 = vpop.f32.mrf.mxu0
  %v509 = vadd.f32 0.0, %v508
  %510 = vmatprep.mubr.f32.mxu0 0.0
  %511 = vmatmul.mubr.f32.gmra.mxu0 %v438
  %v512 = vpop.f32.mrf.mxu0
  %v513 = vadd.f32 0.0, %v512
  %v514 = vpop.f32.mrf.mxu0
  %v515 = vadd.f32 0.0, %v514
  %516 = vdwg.mxu0
  %517 = vmatprep.subr.mxu0 0.0
  %518 = vmatpush1.msra.mxu0 0.0
  %519 = vmatprep.subr.mxu0 0.0
  %520 = vmatpush1.msra.mxu0 0.0
  %521 = vmatprep.subr.mxu0 0.0
  %522 = vmatpush1.msra.mxu0 0.0
  %523 = vmatprep.subr.mxu0 0.0
  %524 = vmatpush1.msra.mxu0 0.0
  %525 = vmatprep.subr.mxu0 0.0
  %526 = vmatpush1.msra.mxu0 0.0
  %527 = vmatprep.subr.mxu0 0.0
  %528 = vmatpush1.msra.mxu0 0.0
  %529 = vmatprep.subr.mxu0 %v432
  %530 = vmatpush1.msra.mxu0 %v431
  %531 = vmatprep.subr.mxu0 %v428
  %532 = vmatpush1.msra.mxu0 %v427
  %533 = vmatprep.subr.mxu0 %v424
  %534 = vmatpush1.msra.mxu0 %v423
  %535 = vmatprep.subr.mxu0 %v420
  %536 = vmatpush1.msra.mxu0 %v419
  %537 = vmatprep.subr.mxu0 %v416
  %538 = vmatpush1.msra.mxu0 %v415
  %539 = vmatprep.subr.mxu0 %v412
  %540 = vmatpush1.msra.mxu0 %v411
  %541 = vmatprep.subr.mxu0 %v408
  %542 = vmatpush1.msra.mxu0 %v407
  %543 = vmatprep.subr.mxu0 %v404
  %544 = vmatpush1.msra.mxu0 %v403
  %545 = vmatprep.subr.mxu0 %v400
  %546 = vmatpush1.msra.mxu0 %v399
  %547 = vmatprep.subr.mxu0 %v396
  %548 = vmatpush1.msra.mxu0 %v395
  %549 = vmatprep.subr.mxu0 0.0
  %550 = vmatpush2.msra.mxu0 0.0
  %551 = vmatprep.subr.mxu0 0.0
  %552 = vmatpush2.msra.mxu0 0.0
  %553 = vmatprep.subr.mxu0 0.0
  %554 = vmatpush2.msra.mxu0 0.0
  %555 = vmatprep.subr.mxu0 0.0
  %556 = vmatpush2.msra.mxu0 0.0
  %557 = vmatprep.subr.mxu0 0.0
  %558 = vmatpush2.msra.mxu0 0.0
  %559 = vmatprep.subr.mxu0 0.0
  %560 = vmatpush2.msra.mxu0 0.0
  %561 = vmatprep.subr.mxu0 0.0
  %562 = vmatpush2.msra.mxu0 0.0
  %563 = vmatprep.subr.mxu0 0.0
  %564 = vmatpush2.msra.mxu0 0.0
  %565 = vmatprep.subr.mxu0 0.0
  %566 = vmatpush2.msra.mxu0 0.0
  %567 = vmatprep.subr.mxu0 0.0
  %568 = vmatpush2.msra.mxu0 0.0
  %569 = vmatprep.subr.mxu0 0.0
  %570 = vmatpush2.msra.mxu0 0.0
  %571 = vmatprep.subr.mxu0 0.0
  %572 = vmatpush2.msra.mxu0 0.0
  %573 = vmatprep.subr.mxu0 0.0
  %574 = vmatpush2.msra.mxu0 0.0
  %575 = vmatprep.subr.mxu0 0.0
  %576 = vmatpush2.msra.mxu0 0.0
  %577 = vmatprep.subr.mxu0 0.0
  %578 = vmatpush2.msra.mxu0 0.0
  %579 = vmatprep.subr.mxu0 0.0
  %580 = vmatpush2.msra.mxu0 0.0
  %581 = vmatprep.mubr.f32.mxu0 0.0
  %582 = vmatmul.mubr.f32.gmra.mxu0 %v435
  %v583 = vpop.f32.mrf.mxu0
  %v584 = vadd.f32 0.0, %v583
  %v585 = vpop.f32.mrf.mxu0
  %v586 = vadd.f32 0.0, %v585
  %587 = vmatprep.mubr.f32.mxu0 0.0
  %588 = vmatmul.mubr.f32.gmra.mxu0 %v438
  %v589 = vpop.f32.mrf.mxu0
  %v590 = vadd.f32 0.0, %v589
  %v591 = vpop.f32.mrf.mxu0
  %v592 = vadd.f32 0.0, %v591
  %593 = vdwg.mxu0
  %594 = vst [vmem:[%s2] sm:$0xff] %v507
  %595 = vst [vmem:[%s2 + $0x8] sm:$0xff] %v509
  %596 = vst [vmem:[%s2 + $0x10] sm:$0xff] %v513
  %597 = vst [vmem:[%s2 + $0x18] sm:$0xff] %v515
  %s598 = scalar_lea.vmem %s2, 32
  %599 = vst [vmem:[%s598] sm:$0xff] %v584
  %600 = vst [vmem:[%s598 + $0x8] sm:$0xff] %v586
  %601 = vst [vmem:[%s598 + $0x10] sm:$0xff] %v590
  %602 = vst [vmem:[%s598 + $0x18] sm:$0xff] %v592
  // Predicated region
  $region10: #{upsample_forward.1} parent=0 // pred_check
    _
  $region11: #{upsample_forward.1} parent=0 // pred_check_branch
    %604 = sbr.rel (0) target = $region13
  $region12: #{upsample_forward.1} parent=0 // pred_region
    _
  $region13: #{upsample_forward.1} parent=0 // pred_fallthru
    _
  // Predicated region
  $region14: #{upsample_forward.1} parent=0 // pred_check
    _
  $region15: #{upsample_forward.1} parent=0 // pred_check_branch
    %606 = sbr.rel (0) target = $region17
  $region16: #{upsample_forward.1} parent=0 // pred_region
    _
  $region17: #{upsample_forward.1} parent=0 // pred_fallthru
    _

</llo_original>
